<compile_context>
chip_gen: v7x
topology: tpu7x:2x2x1
jax: 0.10.0
libtpu: 0.0.40
codegen_flags: <defaults>
</compile_context>

<pallas_src>
import functools

import jax
import jax.numpy as jnp
from jax import lax
from jax.experimental import pallas as pl
from jax.experimental.pallas import tpu as pltpu

_LANES = 128
_TARGET_BLOCK_ROWS = 1024   # (1024, 128) f32 block = 512 KiB per pipeline buffer
_NCORES = 2                 # v7x has 2 TensorCores; harmless on v5e/v6e (1 TC)


def _round_up(a, b):
    return (a + b - 1) // b * b


def _dice_kernel(x_ref, t_ref, o_ref, acc_ref, *, n, block_rows,
                 steps_per_core, needs_mask):
    """Accumulates sum(p*t) and sum(p+t) into (8,128) vector accumulators.

    acc layout (VMEM f32[2, 8, 128]):
      acc[0] = partial sums of p * t   (intersection)
      acc[1] = partial sums of p + t   (denominator, minus smooth)
    """
    i = pl.program_id(1)

    @pl.when(i == 0)
    def _init():
        acc_ref[...] = jnp.zeros_like(acc_ref)

    x = x_ref[...].astype(jnp.float32)
    t = t_ref[...].astype(jnp.float32)
    p = jax.nn.sigmoid(x)

    if needs_mask:
        # Tail / out-of-range-block masking. Only compiled in (static Python
        # bool) when the covered element span exceeds the true count n.
        c = pl.program_id(0)
        base = (c * steps_per_core + i) * (block_rows * _LANES)
        row_iota = lax.broadcasted_iota(jnp.int32, (block_rows, _LANES), 0)
        lane_iota = lax.broadcasted_iota(jnp.int32, (block_rows, _LANES), 1)
        valid = (base + row_iota * _LANES + lane_iota) < n
        p = jnp.where(valid, p, 0.0)
        t = jnp.where(valid, t, 0.0)

    def _fold(v):  # (block_rows, 128) -> (8, 128): elementwise VPU adds only
        return jnp.sum(v.reshape(block_rows // 8, 8, _LANES), axis=0)

    acc_ref[0] += _fold(p * t)
    acc_ref[1] += _fold(p + t)

    @pl.when(i == steps_per_core - 1)
    def _finalize():
        o_ref[0] = acc_ref[...]


@functools.partial(jax.jit, static_argnames=("smooth",))
def dice_loss(inputs, targets, smooth=1.0):
    """Pallas implementation of DiceLoss.forward. Returns a scalar f32."""
    n = inputs.size
    flat_x = inputs.reshape(-1)
    flat_t = targets.reshape(-1)

    # Make the (rows, 128) view legal with rows a multiple of 8. This is a free
    # reshape when n is already a multiple of 1024 (the common case, including
    # the demo below); otherwise we pad the tail and mask it in-kernel.
    padded = _round_up(n, 8 * _LANES)
    if padded != n:
        flat_x = jnp.pad(flat_x, (0, padded - n))
        flat_t = jnp.pad(flat_t, (0, padded - n))

    rows = padded // _LANES
    x2 = flat_x.reshape(rows, _LANES)
    t2 = flat_t.reshape(rows, _LANES)

    block_rows = rows if rows <= _TARGET_BLOCK_ROWS else _TARGET_BLOCK_ROWS
    nblocks = pl.cdiv(rows, block_rows)
    steps_per_core = pl.cdiv(nblocks, _NCORES)
    covered = _NCORES * steps_per_core * block_rows * _LANES
    needs_mask = covered != n  # static Python bool

    def in_map(c, i):
        # Clamp so grid slots past the last row-block (odd block counts / tiny
        # inputs) re-read a valid block; their contribution is masked to zero.
        return (jnp.minimum(c * steps_per_core + i, nblocks - 1), 0)

    kernel = functools.partial(
        _dice_kernel, n=n, block_rows=block_rows,
        steps_per_core=steps_per_core, needs_mask=needs_mask)

    partials = pl.pallas_call(
        kernel,
        out_shape=jax.ShapeDtypeStruct((_NCORES, 2, 8, _LANES), jnp.float32),
        grid_spec=pltpu.PrefetchScalarGridSpec(
            num_scalar_prefetch=0,
            grid=(_NCORES, steps_per_core),
            in_specs=[pl.BlockSpec((block_rows, _LANES), in_map),
                      pl.BlockSpec((block_rows, _LANES), in_map)],
            out_specs=pl.BlockSpec((1, 2, 8, _LANES),
                                   lambda c, i: (c, 0, 0, 0)),
            scratch_shapes=[pltpu.VMEM((2, 8, _LANES), jnp.float32)],
        ),
        compiler_params=pltpu.CompilerParams(
            dimension_semantics=("parallel", "arbitrary")),
    )(x2, t2)

    intersection = jnp.sum(partials[:, 0])
    denom = jnp.sum(partials[:, 1])
    dice = (2.0 * intersection + smooth) / (denom + smooth)
    return (1.0 - dice).astype(jnp.float32)


def _reference(inputs, targets, smooth=1.0):
    p = jax.nn.sigmoid(inputs.astype(jnp.float32)).reshape(-1)
    t = targets.astype(jnp.float32).reshape(-1)
    intersection = jnp.sum(p * t)
    dice = (2.0 * intersection + smooth) / (jnp.sum(p) + jnp.sum(t) + smooth)
    return 1.0 - dice


if __name__ == "__main__":
    key = jax.random.PRNGKey(0)
    k1, k2 = jax.random.split(key)
    # Segmentation-like shapes: batch=2, channels=4, spatial=16x16 (NCHW).
    x = jax.random.normal(k1, (2, 4, 16, 16), dtype=jnp.float32)
    tgt = (jax.random.uniform(k2, (2, 4, 16, 16)) > 0.5).astype(jnp.float32)

    loss = dice_loss(x, tgt, smooth=1.0)
    jax.block_until_ready(loss)

    ref = _reference(x, tgt, smooth=1.0)
    assert jnp.allclose(loss, ref, rtol=1e-5, atol=1e-5), (loss, ref)

    print("KERNEL_OK")
</pallas_src>

<mosaic_0001>
module attributes {stable_mosaic.version = 11 : i64} {
  func.func @_dice_kernel(%arg0: i32, %arg1: i32, %arg2: memref<16x128xf32, #tpu.memory_space<vmem>>, %arg3: memref<16x128xf32, #tpu.memory_space<vmem>>, %arg4: memref<1x2x8x128xf32, #tpu.memory_space<vmem>>, %arg5: memref<2x8x128xf32, #tpu.memory_space<vmem>>) attributes {dimension_semantics = [#tpu.dimension_semantics<parallel>, #tpu.dimension_semantics<arbitrary>], iteration_bounds = array<i64: 2, 1>, scalar_prefetch = 0 : i64, scratch_operands = 1 : i64, tpu.core_type = #tpu.core_type<tc>, window_params = [{transform_indices = @transform_0, window_bounds = array<i64: 16, 128>}, {transform_indices = @transform_1, window_bounds = array<i64: 16, 128>}, {transform_indices = @transform_2, window_bounds = array<i64: 1, 2, 8, 128>}]} {
    %c0_i32 = arith.constant 0 : i32
    %0 = arith.cmpi eq, %arg1, %c0_i32 : i32
    %1 = arith.extui %0 : i1 to i32
    %c0_i32_0 = arith.constant 0 : i32
    %2 = arith.cmpi ne, %1, %c0_i32_0 : i32
    scf.if %2 {
      %cst_22 = arith.constant 0.000000e+00 : f32
      %47 = vector.broadcast %cst_22 : f32 to vector<2x8x128xf32>
      %c0_23 = arith.constant 0 : index
      %c0_24 = arith.constant 0 : index
      %c0_25 = arith.constant 0 : index
      %48 = vector.load %arg5[%c0_23, %c0_24, %c0_25] : memref<2x8x128xf32, #tpu.memory_space<vmem>>, vector<2x8x128xf32>
      tpu.vector_store %arg5[%c0_23, %c0_24, %c0_25], %47 {strides = array<i32>} : memref<2x8x128xf32, #tpu.memory_space<vmem>>, vector<2x8x128xf32>,
    } else {
    }
    %c0 = arith.constant 0 : index
    %c0_1 = arith.constant 0 : index
    %3 = vector.load %arg2[%c0, %c0_1] : memref<16x128xf32, #tpu.memory_space<vmem>>, vector<16x128xf32>
    %c0_2 = arith.constant 0 : index
    %c0_3 = arith.constant 0 : index
    %4 = vector.load %arg3[%c0_2, %c0_3] : memref<16x128xf32, #tpu.memory_space<vmem>>, vector<16x128xf32>
    %5 = arith.negf %3 : vector<16x128xf32>
    %6 = math.exp %5 : vector<16x128xf32>
    %cst = arith.constant 1.000000e+00 : f32
    %7 = vector.broadcast %cst : f32 to vector<16x128xf32>
    %8 = arith.addf %7, %6 : vector<16x128xf32>
    %9 = arith.divf %7, %8 : vector<16x128xf32>
    %c1_i32 = arith.constant 1 : i32
    %10 = arith.muli %arg0, %c1_i32 : i32
    %11 = arith.addi %10, %arg1 : i32
    %c2048_i32 = arith.constant 2048 : i32
    %12 = arith.muli %11, %c2048_i32 : i32
    %13 = tpu.iota {dimensions = array<i32: 0>} : vector<16x128xi32>
    %14 = tpu.iota {dimensions = array<i32: 1>} : vector<16x128xi32>
    %c128_i32 = arith.constant 128 : i32
    %15 = vector.broadcast %c128_i32 : i32 to vector<16x128xi32>
    %16 = arith.muli %13, %15 : vector<16x128xi32>
    %17 = vector.broadcast %12 : i32 to vector<16x128xi32>
    %18 = arith.addi %17, %16 : vector<16x128xi32>
    %19 = arith.addi %18, %14 : vector<16x128xi32>
    %c2048_i32_4 = arith.constant 2048 : i32
    %20 = vector.broadcast %c2048_i32_4 : i32 to vector<16x128xi32>
    %21 = arith.cmpi slt, %19, %20 : vector<16x128xi32>
    %cst_5 = arith.constant 0.000000e+00 : f32
    %22 = vector.broadcast %cst_5 : f32 to vector<16x128xf32>
    %23 = arith.select %21, %9, %22 : vector<16x128xi1>, vector<16x128xf32>
    %cst_6 = arith.constant 0.000000e+00 : f32
    %24 = vector.broadcast %cst_6 : f32 to vector<16x128xf32>
    %25 = arith.select %21, %4, %24 : vector<16x128xi1>, vector<16x128xf32>
    %c0_7 = arith.constant 0 : index
    %c0_8 = arith.constant 0 : index
    %c0_9 = arith.constant 0 : index
    %26 = vector.load %arg5[%c0_7, %c0_8, %c0_9] : memref<2x8x128xf32, #tpu.memory_space<vmem>>, vector<1x8x128xf32>
    %27 = vector.shape_cast %26 : vector<1x8x128xf32> to vector<8x128xf32>
    %28 = arith.mulf %23, %25 : vector<16x128xf32>
    %29 = vector.shape_cast %28 : vector<16x128xf32> to vector<2x8x128xf32>
    %cst_10 = arith.constant dense<0.000000e+00> : vector<8x128xf32>
    %30 = vector.multi_reduction <add>, %29, %cst_10 [0] : vector<2x8x128xf32> to vector<8x128xf32>
    %31 = arith.addf %27, %30 : vector<8x128xf32>
    %c0_11 = arith.constant 0 : index
    %c0_12 = arith.constant 0 : index
    %c0_13 = arith.constant 0 : index
    %32 = vector.load %arg5[%c0_11, %c0_12, %c0_13] : memref<2x8x128xf32, #tpu.memory_space<vmem>>, vector<1x8x128xf32>
    %33 = vector.shape_cast %32 : vector<1x8x128xf32> to vector<8x128xf32>
    %34 = vector.shape_cast %31 : vector<8x128xf32> to vector<1x8x128xf32>
    tpu.vector_store %arg5[%c0_11, %c0_12, %c0_13], %34 {strides = array<i32>} : memref<2x8x128xf32, #tpu.memory_space<vmem>>, vector<1x8x128xf32>,
    %c1 = arith.constant 1 : index
    %c0_14 = arith.constant 0 : index
    %c0_15 = arith.constant 0 : index
    %35 = vector.load %arg5[%c1, %c0_14, %c0_15] : memref<2x8x128xf32, #tpu.memory_space<vmem>>, vector<1x8x128xf32>
    %36 = vector.shape_cast %35 : vector<1x8x128xf32> to vector<8x128xf32>
    %37 = arith.addf %23, %25 : vector<16x128xf32>
    %38 = vector.shape_cast %37 : vector<16x128xf32> to vector<2x8x128xf32>
    %cst_16 = arith.constant dense<0.000000e+00> : vector<8x128xf32>
    %39 = vector.multi_reduction <add>, %38, %cst_16 [0] : vector<2x8x128xf32> to vector<8x128xf32>
    %40 = arith.addf %36, %39 : vector<8x128xf32>
    %c1_17 = arith.constant 1 : index
    %c0_18 = arith.constant 0 : index
    %c0_19 = arith.constant 0 : index
    %41 = vector.load %arg5[%c1_17, %c0_18, %c0_19] : memref<2x8x128xf32, #tpu.memory_space<vmem>>, vector<1x8x128xf32>
    %42 = vector.shape_cast %41 : vector<1x8x128xf32> to vector<8x128xf32>
    %43 = vector.shape_cast %40 : vector<8x128xf32> to vector<1x8x128xf32>
    tpu.vector_store %arg5[%c1_17, %c0_18, %c0_19], %43 {strides = array<i32>} : memref<2x8x128xf32, #tpu.memory_space<vmem>>, vector<1x8x128xf32>,
    %c0_i32_20 = arith.constant 0 : i32
    %44 = arith.cmpi eq, %arg1, %c0_i32_20 : i32
    %45 = arith.extui %44 : i1 to i32
    %c0_i32_21 = arith.constant 0 : i32
    %46 = arith.cmpi ne, %45, %c0_i32_21 : i32
    scf.if %46 {
      %c0_22 = arith.constant 0 : index
      %c0_23 = arith.constant 0 : index
      %c0_24 = arith.constant 0 : index
      %47 = vector.load %arg5[%c0_22, %c0_23, %c0_24] : memref<2x8x128xf32, #tpu.memory_space<vmem>>, vector<2x8x128xf32>
      %c0_25 = arith.constant 0 : index
      %c0_26 = arith.constant 0 : index
      %c0_27 = arith.constant 0 : index
      %c0_28 = arith.constant 0 : index
      %48 = vector.load %arg4[%c0_25, %c0_26, %c0_27, %c0_28] : memref<1x2x8x128xf32, #tpu.memory_space<vmem>>, vector<1x2x8x128xf32>
      %49 = vector.shape_cast %48 : vector<1x2x8x128xf32> to vector<2x8x128xf32>
      %50 = vector.shape_cast %47 : vector<2x8x128xf32> to vector<1x2x8x128xf32>
      tpu.vector_store %arg4[%c0_25, %c0_26, %c0_27, %c0_28], %50 {strides = array<i32>} : memref<1x2x8x128xf32, #tpu.memory_space<vmem>>, vector<1x2x8x128xf32>,
    } else {
    }
    return
  }
  func.func @transform_0(%arg0: i32, %arg1: i32) -> (i32, i32) {
    %c1_i32 = arith.constant 1 : i32
    %0 = arith.muli %arg0, %c1_i32 : i32
    %1 = arith.addi %0, %arg1 : i32
    %c0_i32 = arith.constant 0 : i32
    %2 = arith.minsi %1, %c0_i32 : i32
    %c0_i32_0 = arith.constant 0 : i32
    %c0_i32_1 = arith.constant 0 : i32
    return %2, %c0_i32_0 : i32, i32
  }
  func.func @transform_1(%arg0: i32, %arg1: i32) -> (i32, i32) {
    %c1_i32 = arith.constant 1 : i32
    %0 = arith.muli %arg0, %c1_i32 : i32
    %1 = arith.addi %0, %arg1 : i32
    %c0_i32 = arith.constant 0 : i32
    %2 = arith.minsi %1, %c0_i32 : i32
    %c0_i32_0 = arith.constant 0 : i32
    %c0_i32_1 = arith.constant 0 : i32
    return %2, %c0_i32_0 : i32, i32
  }
  func.func @transform_2(%arg0: i32, %arg1: i32) -> (i32, i32, i32, i32) {
    %c0_i32 = arith.constant 0 : i32
    %c0_i32_0 = arith.constant 0 : i32
    %c0_i32_1 = arith.constant 0 : i32
    %c0_i32_2 = arith.constant 0 : i32
    return %arg0, %c0_i32, %c0_i32_0, %c0_i32_1 : i32, i32, i32, i32
  }
}

</mosaic_0001>

<llo_original>
// kernel: dice_loss.1
$region0: #{dice_loss.1}
  #allocation0 [shape = 'u32[]', space=smem, size = 0x4, offset = 0x4, fixed_abs, tag = 'smem constant byte address 0x4 - core index']
  #allocation1 [shape = 'u32[144,128]{1,0:T(1,128)}', space=vmem, size = 0x12000, scoped, tag = 'internal scratch']
  #allocation2 [shape = 'f32[2,8,128]{2,1,0:T(8,128)}', space=vmem, size = 0x2000, scoped, tag = 'scratch operand']
  %s0 = inlined_call_operand.vmem [shape: f32[16,128], index: 0, kind: input, shape index: {}]
  %s1 = inlined_call_operand.vmem [shape: f32[16,128], index: 1, kind: input, shape index: {}]
  %s2 = inlined_call_operand.vmem [shape: f32[2,2,8,128], index: 2, kind: output, shape index: {}]
  %s3 = sld [smem:[#allocation0]]
  $region49: #{dice_loss.1} parent=0
    _
  %s5 = ssub.s32 1, %s3
  %s6 = scalar_select 0, %s5, %s3
  loop: start=0, step=1, limit=4
  $region2: #{dice_loss.1} parent=0 // loop_pre_header
    _
  $region3: #{dice_loss.1} parent=0 // loop_header
    %s8 = sphi 0, %s12
    %p9 = scmp.ge.s32.totalorder %s8, 4
    %s15 = sphi 0, %s27
    %s16 = sphi 0, %s23
    %s17 = sphi 0, %s15
    %s18 = sphi 0, %s16
    %s19 = sphi 0, %s17
    %s20 = sphi 0, %s18
    %s36 = sphi 0, %s38
    %s39 = sphi 0, %s36
    %s40 = sphi 0, %s39
    %s56 = sphi 0, %s40
    %s68 = sphi 0, %s70
    %s71 = sphi 0, %s68
    %s72 = sphi 0, %s71
    %s88 = sphi 0, %s72
    %s94 = sphi 0, %s96
    %s97 = sphi 0, %s94
    %s98 = sphi 0, %s97
    %s114 = sphi 0, %s98
  $region4: #{dice_loss.1} parent=0 // loop_header_branch
    %11 = sbr.rel (%p9) target = $region8
  $region5: #{dice_loss.1} parent=0 // loop_body
    %s13 = ssub.s32 %s8, 1
    %s14 = ssub.s32 %s8, 2
    %s21 = sadd.s32 1, %s16
    %p22 = scmp.ge.s32.totalorder %s21, 1
    %s23 = scalar_select %p22, 0, %s21
    %s24 = sadd.s32 1, %s15
    %s25 = scalar_select %p22, %s24, %s15
    %p26 = scmp.ge.s32.totalorder %s25, 2
    %s27 = scalar_select %p26, 0, %s25
    %s28 = sadd.s32 %s15, %s16
    %p29 = scmp.lt.s32.totalorder %s28, 0
    %s30 = scalar_select %p29, %s28, 0
    %s31 = sadd.s32 %s27, %s23
    %p32 = scmp.lt.s32.totalorder %s31, 0
    %s33 = scalar_select %p32, %s31, 0
    %s34 = ssub.s32 %s30, %s33
    %p35 = scmp.eq.s32.totalorder %s34, 0
    %s37 = sadd.s32 %s36, 1
    %s38 = scalar_select %p35, %s36, %s37
    %p41 = pneg %p35
    %p42 = scmp.eq.s32.totalorder %s8, 1
    %p43 = por %p41, %p42
    %p44 = scmp.ne.s32.totalorder %s36, %s39
    %p45 = scmp.eq.s32.totalorder %s8, 0
    %p46 = por %p44, %p45
    %p47 = scmp.ne.s32.totalorder %s36, %s39
    %p48 = scmp.eq.s32.totalorder %s13, 1
    %p49 = por %p47, %p48
    %p50 = scmp.ne.s32.totalorder %s39, %s40
    %p51 = scmp.eq.s32.totalorder %s13, 0
    %p52 = por %p50, %p51
    %p53 = scmp.ne.s32.totalorder %s39, %s40
    %p54 = scmp.eq.s32.totalorder %s14, 1
    %p55 = por %p53, %p54
    %p57 = scmp.ne.s32.totalorder %s40, %s56
    %p58 = scmp.eq.s32.totalorder %s14, 0
    %p59 = por %p57, %p58
    %s60 = sadd.s32 %s15, %s16
    %p61 = scmp.lt.s32.totalorder %s60, 0
    %s62 = scalar_select %p61, %s60, 0
    %s63 = sadd.s32 %s27, %s23
    %p64 = scmp.lt.s32.totalorder %s63, 0
    %s65 = scalar_select %p64, %s63, 0
    %s66 = ssub.s32 %s62, %s65
    %p67 = scmp.eq.s32.totalorder %s66, 0
    %s69 = sadd.s32 %s68, 1
    %s70 = scalar_select %p67, %s68, %s69
    %p73 = pneg %p67
    %p74 = scmp.eq.s32.totalorder %s8, 1
    %p75 = por %p73, %p74
    %p76 = scmp.ne.s32.totalorder %s68, %s71
    %p77 = scmp.eq.s32.totalorder %s8, 0
    %p78 = por %p76, %p77
    %p79 = scmp.ne.s32.totalorder %s68, %s71
    %p80 = scmp.eq.s32.totalorder %s13, 1
    %p81 = por %p79, %p80
    %p82 = scmp.ne.s32.totalorder %s71, %s72
    %p83 = scmp.eq.s32.totalorder %s13, 0
    %p84 = por %p82, %p83
    %p85 = scmp.ne.s32.totalorder %s71, %s72
    %p86 = scmp.eq.s32.totalorder %s14, 1
    %p87 = por %p85, %p86
    %p89 = scmp.ne.s32.totalorder %s72, %s88
    %p90 = scmp.eq.s32.totalorder %s14, 0
    %p91 = por %p89, %p90
    %s92 = ssub.s32 %s15, %s27
    %p93 = scmp.eq.s32.totalorder %s92, 0
    %s95 = sadd.s32 %s94, 1
    %s96 = scalar_select %p93, %s94, %s95
    %p99 = pneg %p93
    %p100 = scmp.eq.s32.totalorder %s8, 1
    %p101 = por %p99, %p100
    %p102 = scmp.ne.s32.totalorder %s94, %s97
    %p103 = scmp.eq.s32.totalorder %s8, 0
    %p104 = por %p102, %p103
    %p105 = scmp.ne.s32.totalorder %s94, %s97
    %p106 = scmp.eq.s32.totalorder %s13, 1
    %p107 = por %p105, %p106
    %p108 = scmp.ne.s32.totalorder %s97, %s98
    %p109 = scmp.eq.s32.totalorder %s13, 0
    %p110 = por %p108, %p109
    %p111 = scmp.ne.s32.totalorder %s97, %s98
    %p112 = scmp.eq.s32.totalorder %s14, 1
    %p113 = por %p111, %p112
    %p115 = scmp.ne.s32.totalorder %s98, %s114
    %p116 = scmp.eq.s32.totalorder %s14, 0
    %p117 = por %p115, %p116
    %p118 = scmp.le.s32.totalorder 1, %s8
    %p119 = scmp.lt.s32.totalorder %s8, 3
    %p120 = pnand %p118, %p119
    %p121 = pneg %p120
    // Predicated region
    $region9: #{dice_loss.1} parent=5 // pred_check
      _
    $region10: #{dice_loss.1} parent=5 // pred_check_branch
      %123 = sbr.rel (%p120) target = $region12
    $region11: #{dice_loss.1} parent=5 // pred_region
      %s124 = ssub.s32 %s8, 1
    $region12: #{dice_loss.1} parent=5 // pred_fallthru
      _
    %p125 = scmp.lt.s32.totalorder %s8, 2
    // Predicated region
    $region13: #{dice_loss.1} parent=5 // pred_check
      %p126 = pneg %p125
    $region14: #{dice_loss.1} parent=5 // pred_check_branch
      %128 = sbr.rel (%p126) target = $region16
    $region15: #{dice_loss.1} parent=5 // pred_region
      // Predicated region
      $region17: #{dice_loss.1} parent=15 // pred_check
        %p129 = pneg %p46
      $region18: #{dice_loss.1} parent=15 // pred_check_branch
        %131 = sbr.rel (%p129) target = $region20
      $region19: #{dice_loss.1} parent=15 // pred_region
        %s132 = sadd.s32 %s15, %s16
        %p133 = scmp.lt.s32.totalorder %s132, 0
        %s134 = scalar_select %p133, %s132, 0
        %s135 = smul.u32 2, %s134
        %p136 = scmp.lt.s32.totalorder %s135, 1
        %s137 = scalar_select %p136, %s135, 1
        %s138 = smul.addr %s137, 8
        %s139 = scalar_lea.vmem %s0, %s138
        %s140 = sadd.s32 %s15, %s16
        %p141 = scmp.lt.s32.totalorder %s140, 0
        %s142 = scalar_select %p141, %s140, 0
        %s143 = smul.u32 2, %s142
      $region20: #{dice_loss.1} parent=15 // pred_fallthru
        _
      // Predicated region
      $region21: #{dice_loss.1} parent=15 // pred_check
        %p144 = pneg %p78
      $region22: #{dice_loss.1} parent=15 // pred_check_branch
        %146 = sbr.rel (%p144) target = $region24
      $region23: #{dice_loss.1} parent=15 // pred_region
        %s147 = sadd.s32 %s15, %s16
        %p148 = scmp.lt.s32.totalorder %s147, 0
        %s149 = scalar_select %p148, %s147, 0
        %s150 = smul.u32 2, %s149
        %p151 = scmp.lt.s32.totalorder %s150, 1
        %s152 = scalar_select %p151, %s150, 1
        %s153 = smul.addr %s152, 8
        %s154 = scalar_lea.vmem %s1, %s153
        %s155 = sadd.s32 %s15, %s16
        %p156 = scmp.lt.s32.totalorder %s155, 0
        %s157 = scalar_select %p156, %s155, 0
        %s158 = smul.u32 2, %s157
      $region24: #{dice_loss.1} parent=15 // pred_fallthru
        _
    $region16: #{dice_loss.1} parent=5 // pred_fallthru
      _
    %p159 = scmp.le.s32.totalorder 1, %s8
    %p160 = scmp.lt.s32.totalorder %s8, 3
    %p161 = pnand %p159, %p160
    %p162 = pneg %p161
    // Predicated region
    $region25: #{dice_loss.1} parent=5 // pred_check
      _
    $region26: #{dice_loss.1} parent=5 // pred_check_branch
      %164 = sbr.rel (%p161) target = $region28
    $region27: #{dice_loss.1} parent=5 // pred_region
      %s165 = ssub.s32 %s8, 1
      %s166 = sadd.s32 %s17, %s18
      %p167 = scmp.lt.s32.totalorder %s166, 0
      %s168 = scalar_select %p167, %s166, 0
      %s169 = smul.u32 2, %s168
      %p170 = scmp.lt.s32.totalorder %s169, 1
      %s171 = scalar_select %p170, %s169, 1
      %s172 = smul.addr %s171, 8
      %s173 = scalar_lea.vmem %s0, %s172
      %p174 = pneg %p52
      %p175 = pneg %p49
      %s176 = sadd.s32 %s17, %s18
      %p177 = scmp.lt.s32.totalorder %s176, 0
      %s178 = scalar_select %p177, %s176, 0
      %s179 = smul.u32 2, %s178
      %p180 = scmp.lt.s32.totalorder %s179, 1
      %s181 = scalar_select %p180, %s179, 1
      %s182 = smul.addr %s181, 8
      %s183 = scalar_lea.vmem %s1, %s182
      %p184 = pneg %p84
      %p185 = pneg %p81
      %p186 = pneg %p110
      %p187 = pneg %p107
      %p188 = scmp.lt.s32.totalorder %s17, 1
      %s189 = scalar_select %p188, %s17, 1
      %s190 = smul.addr %s189, 2
      %s191 = smul.addr %s190, 8
      %s192 = scalar_lea.vmem %s2, %s191
      %s193 = sadd.s32 %s17, %s18
      %p194 = scmp.lt.s32.totalorder %s193, 0
      %s195 = scalar_select %p194, %s193, 0
      %s196 = smul.u32 2, %s195
      %p197 = scmp.lt.s32.totalorder %s196, 1
      %s198 = scalar_select %p197, %s196, 1
      %s199 = smul.addr %s198, 8
      %s200 = scalar_lea.vmem %s0, %s199
      %s201 = sadd.s32 %s17, %s18
      %p202 = scmp.lt.s32.totalorder %s201, 0
      %s203 = scalar_select %p202, %s201, 0
      %s204 = smul.u32 2, %s203
      %s205 = sadd.s32 %s17, %s18
      %p206 = scmp.lt.s32.totalorder %s205, 0
      %s207 = scalar_select %p206, %s205, 0
      %s208 = smul.u32 2, %s207
      %p209 = scmp.lt.s32.totalorder %s208, 1
      %s210 = scalar_select %p209, %s208, 1
      %s211 = smul.addr %s210, 8
      %s212 = scalar_lea.vmem %s1, %s211
      %s213 = sadd.s32 %s17, %s18
      %p214 = scmp.lt.s32.totalorder %s213, 0
      %s215 = scalar_select %p214, %s213, 0
      %s216 = smul.u32 2, %s215
      %p217 = scmp.lt.s32.totalorder %s17, 1
      %s218 = scalar_select %p217, %s17, 1
      %s219 = smul.addr %s218, 2
      %s220 = smul.addr %s219, 8
      %s221 = scalar_lea.vmem %s2, %s220
      %p222 = scmp.eq.s32.totalorder %s18, 0
      // Predicated region
      $region29: #{dice_loss.1} parent=27 // pred_check
        %p223 = pneg %p222
      $region30: #{dice_loss.1} parent=27 // pred_check_branch
        %225 = sbr.rel (%p223) target = $region32
      $region31: #{dice_loss.1} parent=27 // pred_region
        %226 = vst [vmem:[#allocation2] sm:$0xff] 0.0
        %227 = vst [vmem:[#allocation2 + $0x8] sm:$0xff] 0.0
      $region32: #{dice_loss.1} parent=27 // pred_fallthru
        _
      %v228 = vld [vmem:[%s200] sm:$0xff]
      %v229 = vld [vmem:[%s200 + $0x8] sm:$0xff]
      %v230 = vld [vmem:[%s212] sm:$0xff]
      %v231 = vld [vmem:[%s212 + $0x8] sm:$0xff]
      %v232 = vxor.u32 %v228, 2147483648
      %v233 = vxor.u32 %v229, 2147483648
      %v234 = vmul.f32 %v232, 1.442695
      %v235 = vpow.pop %v234
      %v236 = vmul.f32 %v233, 1.442695
      %v237 = vpow.pop %v236
      %v238 = vadd.f32 %v235, 1.0
      %v239 = vadd.f32 %v237, 1.0
      %v240 = vrcp.pop %v238
      %v241 = vmul.f32 1.0, %v240
      %v242 = vrcp.pop %v239
      %v243 = vmul.f32 1.0, %v242
      %s244 = sadd.s32 %s17, %s18
      %s245 = smul.u32 %s244, 2048
      %v246 = vlaneseq
      %v247 = vshrl.u32 %v246, 7
      %v248 = vadd.s32 %v247, 8
      %v249 = vlaneseq
      %v250 = vand.u32 %v249, 127
      %v251 = vmul.u32 %v247, 128
      %v252 = vmul.u32 %v248, 128
      %v253 = vstv %s245
      %v254 = vadd.s32 %v253, %v251
      %v255 = vadd.s32 %v253, %v252
      %v256 = vadd.s32 %v254, %v250
      %v257 = vadd.s32 %v255, %v250
      %vm258 = vcmp.lt.s32.totalorder %v256, 2048
      %vm259 = vcmp.lt.s32.totalorder %v257, 2048
      %v260 = vsel %vm258, %v241, 0.0
      %v261 = vsel %vm259, %v243, 0.0
      %v262 = vsel %vm258, %v230, 0.0
      %v263 = vsel %vm259, %v231, 0.0
      %v264 = vld [vmem:[#allocation2] sm:$0xff]
      %v265 = vmul.f32 %v260, %v262
      %v266 = vmul.f32 %v261, %v263
      %v267 = vadd.f32 %v265, %v266
      %v268 = vadd.f32 %v264, %v267
      %269 = vst [vmem:[#allocation2] sm:$0xff] %v268
      %s270 = scalar_lea.vmem [#allocation2], 8
      %v271 = vld [vmem:[%s270] sm:$0xff]
      %v272 = vadd.f32 %v260, %v262
      %v273 = vadd.f32 %v261, %v263
      %v274 = vadd.f32 %v272, %v273
      %v275 = vadd.f32 %v271, %v274
      %276 = vst [vmem:[%s270] sm:$0xff] %v275
      // Predicated region
      $region33: #{dice_loss.1} parent=27 // pred_check
        %p277 = pneg %p222
      $region34: #{dice_loss.1} parent=27 // pred_check_branch
        %279 = sbr.rel (%p277) target = $region36
      $region35: #{dice_loss.1} parent=27 // pred_region
        %v280 = vld [vmem:[#allocation2] sm:$0xff]
        %v281 = vld [vmem:[#allocation2 + $0x8] sm:$0xff]
        %282 = vst [vmem:[%s221] sm:$0xff] %v280
        %283 = vst [vmem:[%s221 + $0x8] sm:$0xff] %v281
      $region36: #{dice_loss.1} parent=27 // pred_fallthru
        _
      %p284 = scmp.lt.s32.totalorder %s17, 1
      %s285 = scalar_select %p284, %s17, 1
      %s286 = smul.addr %s285, 2
      %s287 = smul.addr %s286, 8
      %s288 = scalar_lea.vmem %s2, %s287
      // Predicated region
      $region37: #{dice_loss.1} parent=27 // pred_check
        %p289 = pneg %p107
      $region38: #{dice_loss.1} parent=27 // pred_check_branch
        %291 = sbr.rel (%p289) target = $region40
      $region39: #{dice_loss.1} parent=27 // pred_region
        _
      $region40: #{dice_loss.1} parent=27 // pred_fallthru
        _
    $region28: #{dice_loss.1} parent=5 // pred_fallthru
      _
    %p292 = scmp.le.s32.totalorder 2, %s8
    // Predicated region
    $region41: #{dice_loss.1} parent=5 // pred_check
      %p293 = pneg %p292
    $region42: #{dice_loss.1} parent=5 // pred_check_branch
      %295 = sbr.rel (%p293) target = $region44
    $region43: #{dice_loss.1} parent=5 // pred_region
      %s296 = ssub.s32 %s8, 2
      // Predicated region
      $region45: #{dice_loss.1} parent=43 // pred_check
        %p297 = pneg %p113
      $region46: #{dice_loss.1} parent=43 // pred_check_branch
        %299 = sbr.rel (%p297) target = $region48
      $region47: #{dice_loss.1} parent=43 // pred_region
        %p300 = scmp.lt.s32.totalorder %s19, 1
        %s301 = scalar_select %p300, %s19, 1
        %s302 = smul.addr %s301, 2
        %s303 = smul.addr %s302, 8
        %s304 = scalar_lea.vmem %s2, %s303
      $region48: #{dice_loss.1} parent=43 // pred_fallthru
        _
    $region44: #{dice_loss.1} parent=5 // pred_fallthru
      _
  $region6: #{dice_loss.1} parent=0 // loop_footer
    %s12 = sadd.s32 1, %s8
  $region7: #{dice_loss.1} parent=0 // loop_footer_branch
    %7 = sbr.rel target = $region3
  $region8: #{dice_loss.1} parent=0 // loop_exit
    _

</llo_original>
